<compile_context>
chip_gen: v6e
topology: v6e:2x2x1
jax: 0.10.0
libtpu: 0.0.40
codegen_flags: <defaults>
</compile_context>

<pallas_src>
import functools

import jax
import jax.numpy as jnp
from jax.experimental import pallas as pl
from jax.experimental.pallas import tpu as pltpu


def _round_up(n, m):
    return ((n + m - 1) // m) * m


# --------------------------------------------------------------------------- #
# Kernel
# --------------------------------------------------------------------------- #
def coupling_kernel(
    x_ref, lab_ref, mask_ref,
    w1_ref, b1_ref,                       # fused first layer: (Dp+Lp, 2*Hp), (1, 2*Hp)
    w2s_ref, b2s_ref, w3s_ref, b3s_ref,   # s-network layers 2 & 3 (padded)
    w2t_ref, b2t_ref, w3t_ref, b3t_ref,   # t-network layers 2 & 3 (padded)
    y_ref, ld_ref,
):
    x = x_ref[...]                         # (Bt, Dp) f32
    mask = mask_ref[...]                   # (1, Dp)  f32
    x_mask = x * mask                      # masked input (f32)
    hp = w2s_ref.shape[0]                  # padded hidden width (static)
    mm_dtype = w1_ref.dtype                # matmul operand dtype (bf16 or f32)

    # ---- fused first layer: concat([x*mask, labels]) @ [[Ws1x Wt1x],[Ws1l Wt1l]] ----
    xm = jnp.concatenate([x_mask, lab_ref[...]], axis=1).astype(mm_dtype)   # (Bt, Dp+Lp)
    h1 = jnp.dot(xm, w1_ref[...], preferred_element_type=jnp.float32) + b1_ref[...]
    h1 = jnp.maximum(h1, 0.0)                                               # (Bt, 2*Hp) f32
    h1_s = h1[:, :hp].astype(mm_dtype)     # 128-aligned lane slices
    h1_t = h1[:, hp:].astype(mm_dtype)

    # ---- second layer (s and t) ----
    h2_s = jnp.maximum(
        jnp.dot(h1_s, w2s_ref[...], preferred_element_type=jnp.float32) + b2s_ref[...], 0.0)
    h2_t = jnp.maximum(
        jnp.dot(h1_t, w2t_ref[...], preferred_element_type=jnp.float32) + b2t_ref[...], 0.0)

    # ---- third layer (s and t) ----
    s_out = jnp.tanh(
        jnp.dot(h2_s.astype(mm_dtype), w3s_ref[...],
                preferred_element_type=jnp.float32) + b3s_ref[...])         # (Bt, Dp) f32
    t_out = jnp.dot(h2_t.astype(mm_dtype), w3t_ref[...],
                    preferred_element_type=jnp.float32) + b3t_ref[...]      # (Bt, Dp) f32

    # ---- coupling epilogue (all f32) ----
    one_minus_mask = 1.0 - mask            # hoisted; computed once per tile
    y_ref[...] = x_mask + one_minus_mask * (x * jnp.exp(s_out) + t_out)

    # log|det J| per row; padded s_out columns are exactly 0 so they add nothing.
    ld = jnp.sum(s_out, axis=1, keepdims=True)                              # (Bt, 1)
    ld_ref[...] = jnp.broadcast_to(ld, ld_ref.shape)                        # lane-dense store


# --------------------------------------------------------------------------- #
# Weight fusion + padding (done once, in plain JAX, outside the kernel)
# --------------------------------------------------------------------------- #
def _prepare_weights(params, D, L, H, Dp, Lp, Hp, matmul_dtype):
    (ws1, bs1, ws2, bs2, ws3, bs3, wt1, bt1, wt2, bt2, wt3, bt3) = params

    # Fused first-layer weight: x-part / label-part on K, s / t stacked on N.
    w1 = jnp.zeros((Dp + Lp, 2 * Hp), jnp.float32)
    w1 = w1.at[:D, :H].set(ws1[:D])                 # s, x-part
    w1 = w1.at[Dp:Dp + L, :H].set(ws1[D:])          # s, label-part
    w1 = w1.at[:D, Hp:Hp + H].set(wt1[:D])          # t, x-part
    w1 = w1.at[Dp:Dp + L, Hp:Hp + H].set(wt1[D:])   # t, label-part
    b1 = jnp.zeros((1, 2 * Hp), jnp.float32)
    b1 = b1.at[0, :H].set(bs1).at[0, Hp:Hp + H].set(bt1)

    def padw(w, R, C):
        return jnp.zeros((R, C), jnp.float32).at[:w.shape[0], :w.shape[1]].set(w)

    def padb(b, C):
        return jnp.zeros((1, C), jnp.float32).at[0, :b.shape[0]].set(b)

    w2s, w2t = padw(ws2, Hp, Hp), padw(wt2, Hp, Hp)
    w3s, w3t = padw(ws3, Hp, Dp), padw(wt3, Hp, Dp)
    b2s, b2t = padb(bs2, Hp), padb(bt2, Hp)
    b3s, b3t = padb(bs3, Dp), padb(bt3, Dp)

    md = matmul_dtype   # weights in matmul dtype (bf16); biases stay f32
    return (w1.astype(md), b1,
            w2s.astype(md), b2s, w3s.astype(md), b3s,
            w2t.astype(md), b2t, w3t.astype(md), b3t)


# --------------------------------------------------------------------------- #
# Wrapper
# --------------------------------------------------------------------------- #
@functools.partial(jax.jit, static_argnames=("block_b", "matmul_dtype"))
def conditional_coupling_forward(x, labels, mask, params, *,
                                 block_b=256, matmul_dtype=jnp.bfloat16):
    """x: (B, D), labels: (B, L), mask: (D,). Returns (y: (B, D), log_det: (B,))."""
    B, D = x.shape
    L = labels.shape[1]
    H = params[0].shape[1]          # ws1: (D+L, H)
    assert params[4].shape[1] == D, "output_dim must equal the x feature dim"

    # Lane-dense padded feature widths.
    Dp, Lp, Hp = _round_up(D, 128), _round_up(L, 128), _round_up(H, 128)

    # Batch tiling (sublane-aligned); keeps VMEM bounded independent of B.
    Bt = min(block_b, _round_up(B, 8))
    Bt = _round_up(Bt, 8)
    Bp = _round_up(B, Bt)

    xp = jnp.zeros((Bp, Dp), jnp.float32).at[:B, :D].set(x.astype(jnp.float32))
    labp = jnp.zeros((Bp, Lp), jnp.float32).at[:B, :L].set(labels.astype(jnp.float32))
    maskp = jnp.zeros((1, Dp), jnp.float32).at[0, :D].set(
        jnp.asarray(mask, jnp.float32).reshape(-1))

    weights = _prepare_weights(params, D, L, H, Dp, Lp, Hp, matmul_dtype)

    grid = (Bp // Bt,)
    bmap = lambda i: (i, 0)   # batch-tiled arrays
    cmap = lambda i: (0, 0)   # VMEM-resident constants (weights / biases / mask)

    in_specs = [
        pl.BlockSpec((Bt, Dp), bmap),      # x
        pl.BlockSpec((Bt, Lp), bmap),      # labels
        pl.BlockSpec((1, Dp), cmap),       # mask
    ] + [pl.BlockSpec(w.shape, cmap) for w in weights]

    out_specs = (
        pl.BlockSpec((Bt, Dp), bmap),      # y (lane-dense padded)
        pl.BlockSpec((Bt, 128), bmap),     # log_det slab (lane-dense)
    )

    y_pad, ld_pad = pl.pallas_call(
        coupling_kernel,
        out_shape=(
            jax.ShapeDtypeStruct((Bp, Dp), jnp.float32),
            jax.ShapeDtypeStruct((Bp, 128), jnp.float32),
        ),
        grid=grid,
        in_specs=in_specs,
        out_specs=out_specs,
        compiler_params=pltpu.CompilerParams(
            dimension_semantics=("parallel",),       # megacore sharding on v7x
            vmem_limit_bytes=32 * 1024 * 1024,       # explicit, safe on 64 MiB v7x VMEM
        ),
    )(xp, labp, maskp, *weights)

    return y_pad[:B, :D], ld_pad[:B, 0]


# --------------------------------------------------------------------------- #
# Init + pure-JAX reference (mirrors the PyTorch forward)
# --------------------------------------------------------------------------- #
def init_params(key, input_dim, output_dim, hid_dim):
    """nn.Linear-style init; weights stored transposed as (in, out)."""
    ks = jax.random.split(key, 6)

    def lin(k, fan_in, fan_out):
        bound = 1.0 / jnp.sqrt(fan_in)
        kw, kb = jax.random.split(k)
        w = jax.random.uniform(kw, (fan_in, fan_out), jnp.float32, -bound, bound)
        b = jax.random.uniform(kb, (fan_out,), jnp.float32, -bound, bound)
        return w, b

    ws1, bs1 = lin(ks[0], input_dim, hid_dim)
    ws2, bs2 = lin(ks[1], hid_dim, hid_dim)
    ws3, bs3 = lin(ks[2], hid_dim, output_dim)
    wt1, bt1 = lin(ks[3], input_dim, hid_dim)
    wt2, bt2 = lin(ks[4], hid_dim, hid_dim)
    wt3, bt3 = lin(ks[5], hid_dim, output_dim)
    return (ws1, bs1, ws2, bs2, ws3, bs3, wt1, bt1, wt2, bt2, wt3, bt3)


def reference_forward(x, labels, mask, params, matmul_dtype=jnp.float32):
    """Pure-JAX reference mirroring the PyTorch forward. If matmul_dtype=bf16, the
    dot operands are rounded exactly like the kernel (f32 accumulation)."""
    (ws1, bs1, ws2, bs2, ws3, bs3, wt1, bt1, wt2, bt2, wt3, bt3) = params

    def q(a):
        return a.astype(matmul_dtype).astype(jnp.float32)

    def dense(a, w, b):
        return q(a) @ q(w) + b

    x_mask = x * mask
    x_m = jnp.concatenate([x_mask, labels], axis=1)
    s = jnp.tanh(dense(jnp.maximum(dense(jnp.maximum(dense(x_m, ws1, bs1), 0), ws2, bs2), 0), ws3, bs3))
    t = dense(jnp.maximum(dense(jnp.maximum(dense(x_m, wt1, bt1), 0), wt2, bt2), 0), wt3, bt3)
    y = x_mask + (1 - mask) * (x * jnp.exp(s) + t)
    return y, s.sum(axis=1)


# --------------------------------------------------------------------------- #
# Demo / correctness check
# --------------------------------------------------------------------------- #
if __name__ == "__main__":
    B, D, L, H = 8, 4, 4, 32          # batch, data dim, label dim, hidden
    input_dim = D + L
    key = jax.random.PRNGKey(0)
    kx, kl, kp = jax.random.split(key, 3)

    x = jax.random.normal(kx, (B, D), jnp.float32)
    labels = jax.random.normal(kl, (B, L), jnp.float32)
    mask = jnp.array([1.0, 0.0, 1.0, 0.0], jnp.float32)   # alternating coupling mask

    params = init_params(kp, input_dim, D, H)

    y, log_det = conditional_coupling_forward(x, labels, mask, params)
    jax.block_until_ready((y, log_det))

    mask2d = mask.reshape(1, D)
    # Exact check against a reference that performs the same bf16 operand rounding.
    y_bf, ld_bf = reference_forward(x, labels, mask2d, params, matmul_dtype=jnp.bfloat16)
    assert jnp.allclose(y, y_bf, atol=1e-3, rtol=1e-3), "y mismatch (bf16-mirror reference)"
    assert jnp.allclose(log_det, ld_bf, atol=1e-3, rtol=1e-3), "log_det mismatch (bf16-mirror reference)"
    # Sanity check against the full-f32 PyTorch-equivalent math (bf16-level tolerance).
    y_f32, ld_f32 = reference_forward(x, labels, mask2d, params)
    assert jnp.allclose(y, y_f32, atol=1e-1, rtol=1e-1), "y mismatch (f32 reference)"
    assert jnp.allclose(log_det, ld_f32, atol=1e-1, rtol=1e-1), "log_det mismatch (f32 reference)"

    print("KERNEL_OK")
</pallas_src>

<mosaic_0001>
module attributes {stable_mosaic.version = 11 : i64} {
  func.func @coupling_kernel(%arg0: i32, %arg1: memref<8x128xf32, #tpu.memory_space<vmem>>, %arg2: memref<8x128xf32, #tpu.memory_space<vmem>>, %arg3: memref<1x128xf32, #tpu.memory_space<vmem>>, %arg4: memref<256x256xbf16, #tpu.memory_space<vmem>>, %arg5: memref<1x256xf32, #tpu.memory_space<vmem>>, %arg6: memref<128x128xbf16, #tpu.memory_space<vmem>>, %arg7: memref<1x128xf32, #tpu.memory_space<vmem>>, %arg8: memref<128x128xbf16, #tpu.memory_space<vmem>>, %arg9: memref<1x128xf32, #tpu.memory_space<vmem>>, %arg10: memref<128x128xbf16, #tpu.memory_space<vmem>>, %arg11: memref<1x128xf32, #tpu.memory_space<vmem>>, %arg12: memref<128x128xbf16, #tpu.memory_space<vmem>>, %arg13: memref<1x128xf32, #tpu.memory_space<vmem>>, %arg14: memref<8x128xf32, #tpu.memory_space<vmem>>, %arg15: memref<8x128xf32, #tpu.memory_space<vmem>>) attributes {dimension_semantics = [#tpu.dimension_semantics<parallel>], iteration_bounds = array<i64: 1>, scalar_prefetch = 0 : i64, scratch_operands = 0 : i64, tpu.core_type = #tpu.core_type<tc>, window_params = [{transform_indices = @transform_0, window_bounds = array<i64: 8, 128>}, {transform_indices = @transform_1, window_bounds = array<i64: 8, 128>}, {pipeline_mode = #tpu.pipeline_mode<synchronous>, transform_indices = @transform_2, window_bounds = array<i64: 1, 128>}, {pipeline_mode = #tpu.pipeline_mode<synchronous>, transform_indices = @transform_3, window_bounds = array<i64: 256, 256>}, {pipeline_mode = #tpu.pipeline_mode<synchronous>, transform_indices = @transform_4, window_bounds = array<i64: 1, 256>}, {pipeline_mode = #tpu.pipeline_mode<synchronous>, transform_indices = @transform_5, window_bounds = array<i64: 128, 128>}, {pipeline_mode = #tpu.pipeline_mode<synchronous>, transform_indices = @transform_6, window_bounds = array<i64: 1, 128>}, {pipeline_mode = #tpu.pipeline_mode<synchronous>, transform_indices = @transform_7, window_bounds = array<i64: 128, 128>}, {pipeline_mode = #tpu.pipeline_mode<synchronous>, transform_indices = @transform_8, window_bounds = array<i64: 1, 128>}, {pipeline_mode = #tpu.pipeline_mode<synchronous>, transform_indices = @transform_9, window_bounds = array<i64: 128, 128>}, {pipeline_mode = #tpu.pipeline_mode<synchronous>, transform_indices = @transform_10, window_bounds = array<i64: 1, 128>}, {pipeline_mode = #tpu.pipeline_mode<synchronous>, transform_indices = @transform_11, window_bounds = array<i64: 128, 128>}, {pipeline_mode = #tpu.pipeline_mode<synchronous>, transform_indices = @transform_12, window_bounds = array<i64: 1, 128>}, {transform_indices = @transform_13, window_bounds = array<i64: 8, 128>}, {transform_indices = @transform_14, window_bounds = array<i64: 8, 128>}]} {
    %c0 = arith.constant 0 : index
    %c0_0 = arith.constant 0 : index
    %0 = vector.load %arg1[%c0, %c0_0] : memref<8x128xf32, #tpu.memory_space<vmem>>, vector<8x128xf32>
    %c0_1 = arith.constant 0 : index
    %c0_2 = arith.constant 0 : index
    %1 = vector.load %arg3[%c0_1, %c0_2] : memref<1x128xf32, #tpu.memory_space<vmem>>, vector<1x128xf32>
    %2 = vector.broadcast %1 : vector<1x128xf32> to vector<8x128xf32>
    %3 = arith.mulf %0, %2 : vector<8x128xf32>
    %c0_3 = arith.constant 0 : index
    %c0_4 = arith.constant 0 : index
    %4 = vector.load %arg2[%c0_3, %c0_4] : memref<8x128xf32, #tpu.memory_space<vmem>>, vector<8x128xf32>
    %5 = tpu.concatenate %3, %4 in 1 : vector<8x128xf32>, vector<8x128xf32> -> vector<8x256xf32>
    %6 = arith.truncf %5 : vector<8x256xf32> to vector<8x256xbf16>
    %c0_5 = arith.constant 0 : index
    %c0_6 = arith.constant 0 : index
    %7 = vector.load %arg4[%c0_5, %c0_6] : memref<256x256xbf16, #tpu.memory_space<vmem>>, vector<256x256xbf16>
    %cst = arith.constant dense<0.000000e+00> : vector<8x256xf32>
    %8 = tpu.matmul %6, %7, %cst {dimension_numbers = #tpu.dot_dimension_numbers<[1], [0], [0], [1], [0, 0, 1, 1], [], []>} : vector<8x256xbf16>, vector<256x256xbf16>, vector<8x256xf32> -> vector<8x256xf32>
    %c0_7 = arith.constant 0 : index
    %c0_8 = arith.constant 0 : index
    %9 = vector.load %arg5[%c0_7, %c0_8] : memref<1x256xf32, #tpu.memory_space<vmem>>, vector<1x256xf32>
    %10 = vector.broadcast %9 : vector<1x256xf32> to vector<8x256xf32>
    %11 = arith.addf %8, %10 : vector<8x256xf32>
    %cst_9 = arith.constant 0.000000e+00 : f32
    %12 = vector.broadcast %cst_9 : f32 to vector<8x256xf32>
    %13 = arith.maximumf %11, %12 : vector<8x256xf32>
    %14 = vector.extract_strided_slice %13 {offsets = [0, 0], sizes = [8, 128], strides = [1, 1]} : vector<8x256xf32> to vector<8x128xf32>
    %15 = arith.truncf %14 : vector<8x128xf32> to vector<8x128xbf16>
    %16 = vector.extract_strided_slice %13 {offsets = [0, 128], sizes = [8, 128], strides = [1, 1]} : vector<8x256xf32> to vector<8x128xf32>
    %17 = arith.truncf %16 : vector<8x128xf32> to vector<8x128xbf16>
    %c0_10 = arith.constant 0 : index
    %c0_11 = arith.constant 0 : index
    %18 = vector.load %arg6[%c0_10, %c0_11] : memref<128x128xbf16, #tpu.memory_space<vmem>>, vector<128x128xbf16>
    %cst_12 = arith.constant dense<0.000000e+00> : vector<8x128xf32>
    %19 = tpu.matmul %15, %18, %cst_12 {dimension_numbers = #tpu.dot_dimension_numbers<[1], [0], [0], [1], [0, 0, 1, 1], [], []>} : vector<8x128xbf16>, vector<128x128xbf16>, vector<8x128xf32> -> vector<8x128xf32>
    %c0_13 = arith.constant 0 : index
    %c0_14 = arith.constant 0 : index
    %20 = vector.load %arg7[%c0_13, %c0_14] : memref<1x128xf32, #tpu.memory_space<vmem>>, vector<1x128xf32>
    %21 = vector.broadcast %20 : vector<1x128xf32> to vector<8x128xf32>
    %22 = arith.addf %19, %21 : vector<8x128xf32>
    %cst_15 = arith.constant 0.000000e+00 : f32
    %23 = vector.broadcast %cst_15 : f32 to vector<8x128xf32>
    %24 = arith.maximumf %22, %23 : vector<8x128xf32>
    %c0_16 = arith.constant 0 : index
    %c0_17 = arith.constant 0 : index
    %25 = vector.load %arg10[%c0_16, %c0_17] : memref<128x128xbf16, #tpu.memory_space<vmem>>, vector<128x128xbf16>
    %cst_18 = arith.constant dense<0.000000e+00> : vector<8x128xf32>
    %26 = tpu.matmul %17, %25, %cst_18 {dimension_numbers = #tpu.dot_dimension_numbers<[1], [0], [0], [1], [0, 0, 1, 1], [], []>} : vector<8x128xbf16>, vector<128x128xbf16>, vector<8x128xf32> -> vector<8x128xf32>
    %c0_19 = arith.constant 0 : index
    %c0_20 = arith.constant 0 : index
    %27 = vector.load %arg11[%c0_19, %c0_20] : memref<1x128xf32, #tpu.memory_space<vmem>>, vector<1x128xf32>
    %28 = vector.broadcast %27 : vector<1x128xf32> to vector<8x128xf32>
    %29 = arith.addf %26, %28 : vector<8x128xf32>
    %cst_21 = arith.constant 0.000000e+00 : f32
    %30 = vector.broadcast %cst_21 : f32 to vector<8x128xf32>
    %31 = arith.maximumf %29, %30 : vector<8x128xf32>
    %32 = arith.truncf %24 : vector<8x128xf32> to vector<8x128xbf16>
    %c0_22 = arith.constant 0 : index
    %c0_23 = arith.constant 0 : index
    %33 = vector.load %arg8[%c0_22, %c0_23] : memref<128x128xbf16, #tpu.memory_space<vmem>>, vector<128x128xbf16>
    %cst_24 = arith.constant dense<0.000000e+00> : vector<8x128xf32>
    %34 = tpu.matmul %32, %33, %cst_24 {dimension_numbers = #tpu.dot_dimension_numbers<[1], [0], [0], [1], [0, 0, 1, 1], [], []>} : vector<8x128xbf16>, vector<128x128xbf16>, vector<8x128xf32> -> vector<8x128xf32>
    %c0_25 = arith.constant 0 : index
    %c0_26 = arith.constant 0 : index
    %35 = vector.load %arg9[%c0_25, %c0_26] : memref<1x128xf32, #tpu.memory_space<vmem>>, vector<1x128xf32>
    %36 = vector.broadcast %35 : vector<1x128xf32> to vector<8x128xf32>
    %37 = arith.addf %34, %36 : vector<8x128xf32>
    %38 = math.tanh %37 : vector<8x128xf32>
    %39 = arith.truncf %31 : vector<8x128xf32> to vector<8x128xbf16>
    %c0_27 = arith.constant 0 : index
    %c0_28 = arith.constant 0 : index
    %40 = vector.load %arg12[%c0_27, %c0_28] : memref<128x128xbf16, #tpu.memory_space<vmem>>, vector<128x128xbf16>
    %cst_29 = arith.constant dense<0.000000e+00> : vector<8x128xf32>
    %41 = tpu.matmul %39, %40, %cst_29 {dimension_numbers = #tpu.dot_dimension_numbers<[1], [0], [0], [1], [0, 0, 1, 1], [], []>} : vector<8x128xbf16>, vector<128x128xbf16>, vector<8x128xf32> -> vector<8x128xf32>
    %c0_30 = arith.constant 0 : index
    %c0_31 = arith.constant 0 : index
    %42 = vector.load %arg13[%c0_30, %c0_31] : memref<1x128xf32, #tpu.memory_space<vmem>>, vector<1x128xf32>
    %43 = vector.broadcast %42 : vector<1x128xf32> to vector<8x128xf32>
    %44 = arith.addf %41, %43 : vector<8x128xf32>
    %cst_32 = arith.constant 1.000000e+00 : f32
    %45 = vector.broadcast %cst_32 : f32 to vector<1x128xf32>
    %46 = arith.subf %45, %1 : vector<1x128xf32>
    %47 = math.exp %38 : vector<8x128xf32>
    %48 = arith.mulf %0, %47 : vector<8x128xf32>
    %49 = arith.addf %48, %44 : vector<8x128xf32>
    %50 = vector.broadcast %46 : vector<1x128xf32> to vector<8x128xf32>
    %51 = arith.mulf %50, %49 : vector<8x128xf32>
    %52 = arith.addf %3, %51 : vector<8x128xf32>
    %c0_33 = arith.constant 0 : index
    %c0_34 = arith.constant 0 : index
    %53 = vector.load %arg14[%c0_33, %c0_34] : memref<8x128xf32, #tpu.memory_space<vmem>>, vector<8x128xf32>
    tpu.vector_store %arg14[%c0_33, %c0_34], %52 {strides = array<i32>} : memref<8x128xf32, #tpu.memory_space<vmem>>, vector<8x128xf32>,
    %cst_35 = arith.constant dense<0.000000e+00> : vector<8xf32>
    %54 = vector.multi_reduction <add>, %38, %cst_35 [1] : vector<8x128xf32> to vector<8xf32>
    %55 = vector.shape_cast %54 : vector<8xf32> to vector<8x1xf32>
    %56 = vector.shape_cast %55 : vector<8x1xf32> to vector<8x1xf32>
    %57 = vector.broadcast %56 : vector<8x1xf32> to vector<8x128xf32>
    %c0_36 = arith.constant 0 : index
    %c0_37 = arith.constant 0 : index
    %58 = vector.load %arg15[%c0_36, %c0_37] : memref<8x128xf32, #tpu.memory_space<vmem>>, vector<8x128xf32>
    tpu.vector_store %arg15[%c0_36, %c0_37], %57 {strides = array<i32>} : memref<8x128xf32, #tpu.memory_space<vmem>>, vector<8x128xf32>,
    return
  }
  func.func @transform_0(%arg0: i32) -> (i32, i32) {
    %c0_i32 = arith.constant 0 : i32
    %c0_i32_0 = arith.constant 0 : i32
    return %arg0, %c0_i32 : i32, i32
  }
  func.func @transform_1(%arg0: i32) -> (i32, i32) {
    %c0_i32 = arith.constant 0 : i32
    %c0_i32_0 = arith.constant 0 : i32
    return %arg0, %c0_i32 : i32, i32
  }
  func.func @transform_2(%arg0: i32) -> (i32, i32) {
    %c0_i32 = arith.constant 0 : i32
    %c0_i32_0 = arith.constant 0 : i32
    %c0_i32_1 = arith.constant 0 : i32
    return %c0_i32, %c0_i32_0 : i32, i32
  }
  func.func @transform_3(%arg0: i32) -> (i32, i32) {
    %c0_i32 = arith.constant 0 : i32
    %c0_i32_0 = arith.constant 0 : i32
    %c0_i32_1 = arith.constant 0 : i32
    return %c0_i32, %c0_i32_0 : i32, i32
  }
  func.func @transform_4(%arg0: i32) -> (i32, i32) {
    %c0_i32 = arith.constant 0 : i32
    %c0_i32_0 = arith.constant 0 : i32
    %c0_i32_1 = arith.constant 0 : i32
    return %c0_i32, %c0_i32_0 : i32, i32
  }
  func.func @transform_5(%arg0: i32) -> (i32, i32) {
    %c0_i32 = arith.constant 0 : i32
    %c0_i32_0 = arith.constant 0 : i32
    %c0_i32_1 = arith.constant 0 : i32
    return %c0_i32, %c0_i32_0 : i32, i32
  }
  func.func @transform_6(%arg0: i32) -> (i32, i32) {
    %c0_i32 = arith.constant 0 : i32
    %c0_i32_0 = arith.constant 0 : i32
    %c0_i32_1 = arith.constant 0 : i32
    return %c0_i32, %c0_i32_0 : i32, i32
  }
  func.func @transform_7(%arg0: i32) -> (i32, i32) {
    %c0_i32 = arith.constant 0 : i32
    %c0_i32_0 = arith.constant 0 : i32
    %c0_i32_1 = arith.constant 0 : i32
    return %c0_i32, %c0_i32_0 : i32, i32
  }
  func.func @transform_8(%arg0: i32) -> (i32, i32) {
    %c0_i32 = arith.constant 0 : i32
    %c0_i32_0 = arith.constant 0 : i32
    %c0_i32_1 = arith.constant 0 : i32
    return %c0_i32, %c0_i32_0 : i32, i32
  }
  func.func @transform_9(%arg0: i32) -> (i32, i32) {
    %c0_i32 = arith.constant 0 : i32
    %c0_i32_0 = arith.constant 0 : i32
    %c0_i32_1 = arith.constant 0 : i32
    return %c0_i32, %c0_i32_0 : i32, i32
  }
  func.func @transform_10(%arg0: i32) -> (i32, i32) {
    %c0_i32 = arith.constant 0 : i32
    %c0_i32_0 = arith.constant 0 : i32
    %c0_i32_1 = arith.constant 0 : i32
    return %c0_i32, %c0_i32_0 : i32, i32
  }
  func.func @transform_11(%arg0: i32) -> (i32, i32) {
    %c0_i32 = arith.constant 0 : i32
    %c0_i32_0 = arith.constant 0 : i32
    %c0_i32_1 = arith.constant 0 : i32
    return %c0_i32, %c0_i32_0 : i32, i32
  }
  func.func @transform_12(%arg0: i32) -> (i32, i32) {
    %c0_i32 = arith.constant 0 : i32
    %c0_i32_0 = arith.constant 0 : i32
    %c0_i32_1 = arith.constant 0 : i32
    return %c0_i32, %c0_i32_0 : i32, i32
  }
  func.func @transform_13(%arg0: i32) -> (i32, i32) {
    %c0_i32 = arith.constant 0 : i32
    %c0_i32_0 = arith.constant 0 : i32
    return %arg0, %c0_i32 : i32, i32
  }
  func.func @transform_14(%arg0: i32) -> (i32, i32) {
    %c0_i32 = arith.constant 0 : i32
    %c0_i32_0 = arith.constant 0 : i32
    return %arg0, %c0_i32 : i32, i32
  }
}

</mosaic_0001>

<llo_original>
// kernel: conditional_coupling_forward.1
$region0: #{conditional_coupling_forward.1}
  #allocation0 [shape = 'u32[]', space=smem, size = 0x4, offset = 0x4, fixed_abs, tag = 'smem constant byte address 0x4 - core index']
  #allocation1 [shape = 'u32[144,128]{1,0:T(1,128)}', space=vmem, size = 0x12000, scoped, tag = 'internal scratch']
  %s0 = inlined_call_operand.vmem [shape: f32[8,128], index: 0, kind: input, shape index: {}]
  %s1 = inlined_call_operand.vmem [shape: f32[8,128], index: 1, kind: input, shape index: {}]
  %s2 = inlined_call_operand.vmem [shape: f32[1,128], index: 2, kind: input, shape index: {}]
  %s3 = inlined_call_operand.vmem [shape: bf16[256,256], index: 3, kind: input, shape index: {}]
  %s4 = inlined_call_operand.vmem [shape: f32[1,256], index: 4, kind: input, shape index: {}]
  %s5 = inlined_call_operand.vmem [shape: bf16[128,128], index: 5, kind: input, shape index: {}]
  %s6 = inlined_call_operand.vmem [shape: f32[1,128], index: 6, kind: input, shape index: {}]
  %s7 = inlined_call_operand.vmem [shape: bf16[128,128], index: 7, kind: input, shape index: {}]
  %s8 = inlined_call_operand.vmem [shape: f32[1,128], index: 8, kind: input, shape index: {}]
  %s9 = inlined_call_operand.vmem [shape: bf16[128,128], index: 9, kind: input, shape index: {}]
  %s10 = inlined_call_operand.vmem [shape: f32[1,128], index: 10, kind: input, shape index: {}]
  %s11 = inlined_call_operand.vmem [shape: bf16[128,128], index: 11, kind: input, shape index: {}]
  %s12 = inlined_call_operand.vmem [shape: f32[1,128], index: 12, kind: input, shape index: {}]
  %s13 = inlined_call_operand.vmem [shape: f32[8,128], index: 13, kind: output, shape index: {0}]
  %s14 = inlined_call_operand.vmem [shape: f32[8,128], index: 14, kind: output, shape index: {1}]
  %15 = xla_tuple %s13, %s14
  %s16 = sld [smem:[#allocation0]]
  $region70: #{conditional_coupling_forward.1} parent=0
    _
  %s18 = ssub.s32 1, %s16
  %s19 = scalar_select 0, %s18, %s16
  // Predicated region
  $region2: #{conditional_coupling_forward.1} parent=0 // pred_check
    _
  $region3: #{conditional_coupling_forward.1} parent=0 // pred_check_branch
    %21 = sbr.rel (0) target = $region5
  $region4: #{conditional_coupling_forward.1} parent=0 // pred_region
    _
  $region5: #{conditional_coupling_forward.1} parent=0 // pred_fallthru
    _
  // Predicated region
  $region6: #{conditional_coupling_forward.1} parent=0 // pred_check
    _
  $region7: #{conditional_coupling_forward.1} parent=0 // pred_check_branch
    %23 = sbr.rel (0) target = $region9
  $region8: #{conditional_coupling_forward.1} parent=0 // pred_region
    _
  $region9: #{conditional_coupling_forward.1} parent=0 // pred_fallthru
    _
  // Predicated region
  $region10: #{conditional_coupling_forward.1} parent=0 // pred_check
    _
  $region11: #{conditional_coupling_forward.1} parent=0 // pred_check_branch
    %25 = sbr.rel (0) target = $region13
  $region12: #{conditional_coupling_forward.1} parent=0 // pred_region
    _
  $region13: #{conditional_coupling_forward.1} parent=0 // pred_fallthru
    _
  // Predicated region
  $region14: #{conditional_coupling_forward.1} parent=0 // pred_check
    _
  $region15: #{conditional_coupling_forward.1} parent=0 // pred_check_branch
    %27 = sbr.rel (0) target = $region17
  $region16: #{conditional_coupling_forward.1} parent=0 // pred_region
    _
  $region17: #{conditional_coupling_forward.1} parent=0 // pred_fallthru
    _
  // Predicated region
  $region18: #{conditional_coupling_forward.1} parent=0 // pred_check
    _
  $region19: #{conditional_coupling_forward.1} parent=0 // pred_check_branch
    %29 = sbr.rel (0) target = $region21
  $region20: #{conditional_coupling_forward.1} parent=0 // pred_region
    _
  $region21: #{conditional_coupling_forward.1} parent=0 // pred_fallthru
    _
  // Predicated region
  $region22: #{conditional_coupling_forward.1} parent=0 // pred_check
    _
  $region23: #{conditional_coupling_forward.1} parent=0 // pred_check_branch
    %31 = sbr.rel (0) target = $region25
  $region24: #{conditional_coupling_forward.1} parent=0 // pred_region
    _
  $region25: #{conditional_coupling_forward.1} parent=0 // pred_fallthru
    _
  // Predicated region
  $region26: #{conditional_coupling_forward.1} parent=0 // pred_check
    _
  $region27: #{conditional_coupling_forward.1} parent=0 // pred_check_branch
    %33 = sbr.rel (0) target = $region29
  $region28: #{conditional_coupling_forward.1} parent=0 // pred_region
    _
  $region29: #{conditional_coupling_forward.1} parent=0 // pred_fallthru
    _
  // Predicated region
  $region30: #{conditional_coupling_forward.1} parent=0 // pred_check
    _
  $region31: #{conditional_coupling_forward.1} parent=0 // pred_check_branch
    %35 = sbr.rel (0) target = $region33
  $region32: #{conditional_coupling_forward.1} parent=0 // pred_region
    _
  $region33: #{conditional_coupling_forward.1} parent=0 // pred_fallthru
    _
  // Predicated region
  $region34: #{conditional_coupling_forward.1} parent=0 // pred_check
    _
  $region35: #{conditional_coupling_forward.1} parent=0 // pred_check_branch
    %37 = sbr.rel (0) target = $region37
  $region36: #{conditional_coupling_forward.1} parent=0 // pred_region
    _
  $region37: #{conditional_coupling_forward.1} parent=0 // pred_fallthru
    _
  // Predicated region
  $region38: #{conditional_coupling_forward.1} parent=0 // pred_check
    _
  $region39: #{conditional_coupling_forward.1} parent=0 // pred_check_branch
    %39 = sbr.rel (0) target = $region41
  $region40: #{conditional_coupling_forward.1} parent=0 // pred_region
    _
  $region41: #{conditional_coupling_forward.1} parent=0 // pred_fallthru
    _
  // Predicated region
  $region42: #{conditional_coupling_forward.1} parent=0 // pred_check
    _
  $region43: #{conditional_coupling_forward.1} parent=0 // pred_check_branch
    %41 = sbr.rel (0) target = $region45
  $region44: #{conditional_coupling_forward.1} parent=0 // pred_region
    _
  $region45: #{conditional_coupling_forward.1} parent=0 // pred_fallthru
    _
  // Predicated region
  $region46: #{conditional_coupling_forward.1} parent=0 // pred_check
    _
  $region47: #{conditional_coupling_forward.1} parent=0 // pred_check_branch
    %43 = sbr.rel (0) target = $region49
  $region48: #{conditional_coupling_forward.1} parent=0 // pred_region
    _
  $region49: #{conditional_coupling_forward.1} parent=0 // pred_fallthru
    _
  // Predicated region
  $region50: #{conditional_coupling_forward.1} parent=0 // pred_check
    _
  $region51: #{conditional_coupling_forward.1} parent=0 // pred_check_branch
    %45 = sbr.rel (0) target = $region53
  $region52: #{conditional_coupling_forward.1} parent=0 // pred_region
    _
  $region53: #{conditional_coupling_forward.1} parent=0 // pred_fallthru
    _
  %v47 = vld [vmem:[%s0] sm:$0xff]
  %v48 = vld [vmem:[%s2] sm:$0x1]
  %v50 = vlaneseq
  %v51 = vshrl.u32 %v50, 7
  %v52 = vsub.s32 0, %v51
  %v53 = vrot.slane %v48, %v52
  %v55 = vmul.f32 %v47, %v53
  %v56 = vld [vmem:[%s1] sm:$0xff]
  %v57 = vpack.c.bf16 %v55, %v55
  %v58 = vpack.c.bf16 %v56, %v56
  %v59 = vld [vmem:[%s3] sm:$0xff]
  %v60 = vld [vmem:[%s3 + $0x8] sm:$0xff]
  %v61 = vld [vmem:[%s3 + $0x10] sm:$0xff]
  %v62 = vld [vmem:[%s3 + $0x18] sm:$0xff]
  %v63 = vld [vmem:[%s3 + $0x20] sm:$0xff]
  %v64 = vld [vmem:[%s3 + $0x28] sm:$0xff]
  %v65 = vld [vmem:[%s3 + $0x30] sm:$0xff]
  %v66 = vld [vmem:[%s3 + $0x38] sm:$0xff]
  %v67 = vld [vmem:[%s3 + $0x40] sm:$0xff]
  %v68 = vld [vmem:[%s3 + $0x48] sm:$0xff]
  %v69 = vld [vmem:[%s3 + $0x50] sm:$0xff]
  %v70 = vld [vmem:[%s3 + $0x58] sm:$0xff]
  %v71 = vld [vmem:[%s3 + $0x60] sm:$0xff]
  %v72 = vld [vmem:[%s3 + $0x68] sm:$0xff]
  %v73 = vld [vmem:[%s3 + $0x70] sm:$0xff]
  %v74 = vld [vmem:[%s3 + $0x78] sm:$0xff]
  %v75 = vld [vmem:[%s3 + $0x80] sm:$0xff]
  %v76 = vld [vmem:[%s3 + $0x88] sm:$0xff]
  %v77 = vld [vmem:[%s3 + $0x90] sm:$0xff]
  %v78 = vld [vmem:[%s3 + $0x98] sm:$0xff]
  %v79 = vld [vmem:[%s3 + $0xa0] sm:$0xff]
  %v80 = vld [vmem:[%s3 + $0xa8] sm:$0xff]
  %v81 = vld [vmem:[%s3 + $0xb0] sm:$0xff]
  %v82 = vld [vmem:[%s3 + $0xb8] sm:$0xff]
  %v83 = vld [vmem:[%s3 + $0xc0] sm:$0xff]
  %v84 = vld [vmem:[%s3 + $0xc8] sm:$0xff]
  %v85 = vld [vmem:[%s3 + $0xd0] sm:$0xff]
  %v86 = vld [vmem:[%s3 + $0xd8] sm:$0xff]
  %v87 = vld [vmem:[%s3 + $0xe0] sm:$0xff]
  %v88 = vld [vmem:[%s3 + $0xe8] sm:$0xff]
  %v89 = vld [vmem:[%s3 + $0xf0] sm:$0xff]
  %v90 = vld [vmem:[%s3 + $0xf8] sm:$0xff]
  %v91 = vld [vmem:[%s4] sm:$0x3]
  %v93 = vlaneseq
  %v94 = vshrl.u32 %v93, 7
  %v95 = vsub.s32 0, %v94
  %v96 = vrot.slane %v91, %v95
  %v97 = vlaneseq
  %v98 = vshrl.u32 %v97, 7
  %v99 = vsub.s32 1, %v98
  %v100 = vrot.slane %v91, %v99
  %v135 = vunpack.c.l.b16 %v59
  %v136 = vunpack.c.h.b16 %v59
  %v137 = vunpack.c.l.b16 %v60
  %v138 = vunpack.c.h.b16 %v60
  %v139 = vunpack.c.l.b16 %v61
  %v140 = vunpack.c.h.b16 %v61
  %v141 = vunpack.c.l.b16 %v62
  %v142 = vunpack.c.h.b16 %v62
  %v143 = vunpack.c.l.b16 %v63
  %v144 = vunpack.c.h.b16 %v63
  %v145 = vunpack.c.l.b16 %v64
  %v146 = vunpack.c.h.b16 %v64
  %v147 = vunpack.c.l.b16 %v65
  %v148 = vunpack.c.h.b16 %v65
  %v149 = vunpack.c.l.b16 %v66
  %v150 = vunpack.c.h.b16 %v66
  %v151 = vunpack.c.l.b16 %v67
  %v152 = vunpack.c.h.b16 %v67
  %v153 = vunpack.c.l.b16 %v68
  %v154 = vunpack.c.h.b16 %v68
  %v155 = vunpack.c.l.b16 %v69
  %v156 = vunpack.c.h.b16 %v69
  %v157 = vunpack.c.l.b16 %v70
  %v158 = vunpack.c.h.b16 %v70
  %v159 = vunpack.c.l.b16 %v71
  %v160 = vunpack.c.h.b16 %v71
  %v161 = vunpack.c.l.b16 %v72
  %v162 = vunpack.c.h.b16 %v72
  %v163 = vunpack.c.l.b16 %v73
  %v164 = vunpack.c.h.b16 %v73
  %v165 = vunpack.c.l.b16 %v74
  %v166 = vunpack.c.h.b16 %v74
  %v167 = vunpack.c.l.b16 %v75
  %v168 = vunpack.c.h.b16 %v75
  %v169 = vunpack.c.l.b16 %v76
  %v170 = vunpack.c.h.b16 %v76
  %v171 = vunpack.c.l.b16 %v77
  %v172 = vunpack.c.h.b16 %v77
  %v173 = vunpack.c.l.b16 %v78
  %v174 = vunpack.c.h.b16 %v78
  %v175 = vunpack.c.l.b16 %v79
  %v176 = vunpack.c.h.b16 %v79
  %v177 = vunpack.c.l.b16 %v80
  %v178 = vunpack.c.h.b16 %v80
  %v179 = vunpack.c.l.b16 %v81
  %v180 = vunpack.c.h.b16 %v81
  %v181 = vunpack.c.l.b16 %v82
  %v182 = vunpack.c.h.b16 %v82
  %v183 = vunpack.c.l.b16 %v83
  %v184 = vunpack.c.h.b16 %v83
  %v185 = vunpack.c.l.b16 %v84
  %v186 = vunpack.c.h.b16 %v84
  %v187 = vunpack.c.l.b16 %v85
  %v188 = vunpack.c.h.b16 %v85
  %v189 = vunpack.c.l.b16 %v86
  %v190 = vunpack.c.h.b16 %v86
  %v191 = vunpack.c.l.b16 %v87
  %v192 = vunpack.c.h.b16 %v87
  %v193 = vunpack.c.l.b16 %v88
  %v194 = vunpack.c.h.b16 %v88
  %v195 = vunpack.c.l.b16 %v89
  %v196 = vunpack.c.h.b16 %v89
  %v197 = vunpack.c.l.b16 %v90
  %v198 = vunpack.c.h.b16 %v90
  %v199 = vpack.c.b16 %v137, %v135
  %v200 = vpack.c.b16 %v138, %v136
  %v201 = vpack.c.b16 %v141, %v139
  %v202 = vpack.c.b16 %v142, %v140
  %v203 = vpack.c.b16 %v145, %v143
  %v204 = vpack.c.b16 %v146, %v144
  %v205 = vpack.c.b16 %v149, %v147
  %v206 = vpack.c.b16 %v150, %v148
  %v207 = vpack.c.b16 %v153, %v151
  %v208 = vpack.c.b16 %v154, %v152
  %v209 = vpack.c.b16 %v157, %v155
  %v210 = vpack.c.b16 %v158, %v156
  %v211 = vpack.c.b16 %v161, %v159
  %v212 = vpack.c.b16 %v162, %v160
  %v213 = vpack.c.b16 %v165, %v163
  %v214 = vpack.c.b16 %v166, %v164
  %v215 = vpack.c.b16 %v169, %v167
  %v216 = vpack.c.b16 %v170, %v168
  %v217 = vpack.c.b16 %v173, %v171
  %v218 = vpack.c.b16 %v174, %v172
  %v219 = vpack.c.b16 %v177, %v175
  %v220 = vpack.c.b16 %v178, %v176
  %v221 = vpack.c.b16 %v181, %v179
  %v222 = vpack.c.b16 %v182, %v180
  %v223 = vpack.c.b16 %v185, %v183
  %v224 = vpack.c.b16 %v186, %v184
  %v225 = vpack.c.b16 %v189, %v187
  %v226 = vpack.c.b16 %v190, %v188
  %v227 = vpack.c.b16 %v193, %v191
  %v228 = vpack.c.b16 %v194, %v192
  %v229 = vpack.c.b16 %v197, %v195
  %v230 = vpack.c.b16 %v198, %v196
  %263 = vmatprep.subr.bf16.mxu0 %v214
  %264 = vmatpush1.bf16.msra.mxu0 %v213
  %265 = vmatprep.subr.bf16.mxu0 %v212
  %266 = vmatpush1.bf16.msra.mxu0 %v211
  %267 = vmatprep.subr.bf16.mxu0 %v210
  %268 = vmatpush1.bf16.msra.mxu0 %v209
  %269 = vmatprep.subr.bf16.mxu0 %v208
  %270 = vmatpush1.bf16.msra.mxu0 %v207
  %271 = vmatprep.subr.bf16.mxu0 %v206
  %272 = vmatpush1.bf16.msra.mxu0 %v205
  %273 = vmatprep.subr.bf16.mxu0 %v204
  %274 = vmatpush1.bf16.msra.mxu0 %v203
  %275 = vmatprep.subr.bf16.mxu0 %v202
  %276 = vmatpush1.bf16.msra.mxu0 %v201
  %277 = vmatprep.subr.bf16.mxu0 %v200
  %278 = vmatpush1.bf16.msra.mxu0 %v199
  %279 = vmatprep.subr.bf16.mxu0 %v230
  %280 = vmatpush2.bf16.msra.mxu0 %v229
  %281 = vmatprep.subr.bf16.mxu0 %v228
  %282 = vmatpush2.bf16.msra.mxu0 %v227
  %283 = vmatprep.subr.bf16.mxu0 %v226
  %284 = vmatpush2.bf16.msra.mxu0 %v225
  %285 = vmatprep.subr.bf16.mxu0 %v224
  %286 = vmatpush2.bf16.msra.mxu0 %v223
  %287 = vmatprep.subr.bf16.mxu0 %v222
  %288 = vmatpush2.bf16.msra.mxu0 %v221
  %289 = vmatprep.subr.bf16.mxu0 %v220
  %290 = vmatpush2.bf16.msra.mxu0 %v219
  %291 = vmatprep.subr.bf16.mxu0 %v218
  %292 = vmatpush2.bf16.msra.mxu0 %v217
  %293 = vmatprep.subr.bf16.mxu0 %v216
  %294 = vmatpush2.bf16.msra.mxu0 %v215
  %295 = vmatprep.mubr.bf16.mxu0 %v58
  %296 = vmatmul.mubr.bf16.gmra.mxu0 %v57
  %v297 = vpop.f32.mrf.mxu0
  %v298 = vadd.f32 %v96, %v297
  %v299 = vpop.f32.mrf.mxu0
  %v300 = vadd.f32 %v100, %v299
  %v301 = vpop.f32.mrf.mxu0
  %v302 = vpop.f32.mrf.mxu0
  %303 = vdwg.mxu0
  %v304 = vmax.f32 %v298, 0.0
  %v305 = vmax.f32 %v300, 0.0
  %v306 = vpack.c.bf16 %v304, %v304
  %v307 = vpack.c.bf16 %v305, %v305
  %v308 = vld [vmem:[%s5] sm:$0xf]
  %v309 = vld [vmem:[%s5 + $0x4] sm:$0xf]
  %v310 = vld [vmem:[%s5 + $0x8] sm:$0xf]
  %v311 = vld [vmem:[%s5 + $0xc] sm:$0xf]
  %v312 = vld [vmem:[%s5 + $0x10] sm:$0xf]
  %v313 = vld [vmem:[%s5 + $0x14] sm:$0xf]
  %v314 = vld [vmem:[%s5 + $0x18] sm:$0xf]
  %v315 = vld [vmem:[%s5 + $0x1c] sm:$0xf]
  %v316 = vld [vmem:[%s5 + $0x20] sm:$0xf]
  %v317 = vld [vmem:[%s5 + $0x24] sm:$0xf]
  %v318 = vld [vmem:[%s5 + $0x28] sm:$0xf]
  %v319 = vld [vmem:[%s5 + $0x2c] sm:$0xf]
  %v320 = vld [vmem:[%s5 + $0x30] sm:$0xf]
  %v321 = vld [vmem:[%s5 + $0x34] sm:$0xf]
  %v322 = vld [vmem:[%s5 + $0x38] sm:$0xf]
  %v323 = vld [vmem:[%s5 + $0x3c] sm:$0xf]
  %v324 = vld [vmem:[%s6] sm:$0x1]
  %v326 = vlaneseq
  %v327 = vshrl.u32 %v326, 7
  %v328 = vsub.s32 0, %v327
  %v329 = vrot.slane %v324, %v328
  %v347 = vunpack.c.l.b16 %v308
  %v348 = vunpack.c.l.b16 %v309
  %v349 = vunpack.c.l.b16 %v310
  %v350 = vunpack.c.l.b16 %v311
  %v351 = vunpack.c.l.b16 %v312
  %v352 = vunpack.c.l.b16 %v313
  %v353 = vunpack.c.l.b16 %v314
  %v354 = vunpack.c.l.b16 %v315
  %v355 = vunpack.c.l.b16 %v316
  %v356 = vunpack.c.l.b16 %v317
  %v357 = vunpack.c.l.b16 %v318
  %v358 = vunpack.c.l.b16 %v319
  %v359 = vunpack.c.l.b16 %v320
  %v360 = vunpack.c.l.b16 %v321
  %v361 = vunpack.c.l.b16 %v322
  %v362 = vunpack.c.l.b16 %v323
  %v363 = vpack.c.b16 %v348, %v347
  %v364 = vpack.c.b16 %v350, %v349
  %v365 = vpack.c.b16 %v352, %v351
  %v366 = vpack.c.b16 %v354, %v353
  %v367 = vpack.c.b16 %v356, %v355
  %v368 = vpack.c.b16 %v358, %v357
  %v369 = vpack.c.b16 %v360, %v359
  %v370 = vpack.c.b16 %v362, %v361
  %379 = vmatprep.subr.bf16.mxu0 0
  %380 = vmatpush1.bf16.msra.mxu0 %v370
  %381 = vmatprep.subr.bf16.mxu0 0
  %382 = vmatpush1.bf16.msra.mxu0 %v369
  %383 = vmatprep.subr.bf16.mxu0 0
  %384 = vmatpush1.bf16.msra.mxu0 %v368
  %385 = vmatprep.subr.bf16.mxu0 0
  %386 = vmatpush1.bf16.msra.mxu0 %v367
  %387 = vmatprep.subr.bf16.mxu0 0
  %388 = vmatpush1.bf16.msra.mxu0 %v366
  %389 = vmatprep.subr.bf16.mxu0 0
  %390 = vmatpush1.bf16.msra.mxu0 %v365
  %391 = vmatprep.subr.bf16.mxu0 0
  %392 = vmatpush1.bf16.msra.mxu0 %v364
  %393 = vmatprep.subr.bf16.mxu0 0
  %394 = vmatpush1.bf16.msra.mxu0 %v363
  %395 = vmatprep.subr.bf16.mxu0 0
  %396 = vmatpush2.bf16.msra.mxu0 0
  %397 = vmatprep.subr.bf16.mxu0 0
  %398 = vmatpush2.bf16.msra.mxu0 0
  %399 = vmatprep.subr.bf16.mxu0 0
  %400 = vmatpush2.bf16.msra.mxu0 0
  %401 = vmatprep.subr.bf16.mxu0 0
  %402 = vmatpush2.bf16.msra.mxu0 0
  %403 = vmatprep.subr.bf16.mxu0 0
  %404 = vmatpush2.bf16.msra.mxu0 0
  %405 = vmatprep.subr.bf16.mxu0 0
  %406 = vmatpush2.bf16.msra.mxu0 0
  %407 = vmatprep.subr.bf16.mxu0 0
  %408 = vmatpush2.bf16.msra.mxu0 0
  %409 = vmatprep.subr.bf16.mxu0 0
  %410 = vmatpush2.bf16.msra.mxu0 0
  %411 = vmatprep.mubr.bf16.mxu0 0
  %412 = vmatmul.mubr.bf16.gmra.mxu0 %v306
  %v413 = vpop.f32.mrf.mxu0
  %v414 = vadd.f32 %v329, %v413
  %v415 = vpop.f32.mrf.mxu0
  %v416 = vpop.f32.mrf.mxu0
  %v417 = vpop.f32.mrf.mxu0
  %418 = vdwg.mxu0
  %v419 = vmax.f32 %v414, 0.0
  %v420 = vld [vmem:[%s9] sm:$0xf]
  %v421 = vld [vmem:[%s9 + $0x4] sm:$0xf]
  %v422 = vld [vmem:[%s9 + $0x8] sm:$0xf]
  %v423 = vld [vmem:[%s9 + $0xc] sm:$0xf]
  %v424 = vld [vmem:[%s9 + $0x10] sm:$0xf]
  %v425 = vld [vmem:[%s9 + $0x14] sm:$0xf]
  %v426 = vld [vmem:[%s9 + $0x18] sm:$0xf]
  %v427 = vld [vmem:[%s9 + $0x1c] sm:$0xf]
  %v428 = vld [vmem:[%s9 + $0x20] sm:$0xf]
  %v429 = vld [vmem:[%s9 + $0x24] sm:$0xf]
  %v430 = vld [vmem:[%s9 + $0x28] sm:$0xf]
  %v431 = vld [vmem:[%s9 + $0x2c] sm:$0xf]
  %v432 = vld [vmem:[%s9 + $0x30] sm:$0xf]
  %v433 = vld [vmem:[%s9 + $0x34] sm:$0xf]
  %v434 = vld [vmem:[%s9 + $0x38] sm:$0xf]
  %v435 = vld [vmem:[%s9 + $0x3c] sm:$0xf]
  %v436 = vld [vmem:[%s10] sm:$0x1]
  %v438 = vlaneseq
  %v439 = vshrl.u32 %v438, 7
  %v440 = vsub.s32 0, %v439
  %v441 = vrot.slane %v436, %v440
  %v459 = vunpack.c.l.b16 %v420
  %v460 = vunpack.c.l.b16 %v421
  %v461 = vunpack.c.l.b16 %v422
  %v462 = vunpack.c.l.b16 %v423
  %v463 = vunpack.c.l.b16 %v424
  %v464 = vunpack.c.l.b16 %v425
  %v465 = vunpack.c.l.b16 %v426
  %v466 = vunpack.c.l.b16 %v427
  %v467 = vunpack.c.l.b16 %v428
  %v468 = vunpack.c.l.b16 %v429
  %v469 = vunpack.c.l.b16 %v430
  %v470 = vunpack.c.l.b16 %v431
  %v471 = vunpack.c.l.b16 %v432
  %v472 = vunpack.c.l.b16 %v433
  %v473 = vunpack.c.l.b16 %v434
  %v474 = vunpack.c.l.b16 %v435
  %v475 = vpack.c.b16 %v460, %v459
  %v476 = vpack.c.b16 %v462, %v461
  %v477 = vpack.c.b16 %v464, %v463
  %v478 = vpack.c.b16 %v466, %v465
  %v479 = vpack.c.b16 %v468, %v467
  %v480 = vpack.c.b16 %v470, %v469
  %v481 = vpack.c.b16 %v472, %v471
  %v482 = vpack.c.b16 %v474, %v473
  %491 = vmatprep.subr.bf16.mxu0 0
  %492 = vmatpush1.bf16.msra.mxu0 %v482
  %493 = vmatprep.subr.bf16.mxu0 0
  %494 = vmatpush1.bf16.msra.mxu0 %v481
  %495 = vmatprep.subr.bf16.mxu0 0
  %496 = vmatpush1.bf16.msra.mxu0 %v480
  %497 = vmatprep.subr.bf16.mxu0 0
  %498 = vmatpush1.bf16.msra.mxu0 %v479
  %499 = vmatprep.subr.bf16.mxu0 0
  %500 = vmatpush1.bf16.msra.mxu0 %v478
  %501 = vmatprep.subr.bf16.mxu0 0
  %502 = vmatpush1.bf16.msra.mxu0 %v477
  %503 = vmatprep.subr.bf16.mxu0 0
  %504 = vmatpush1.bf16.msra.mxu0 %v476
  %505 = vmatprep.subr.bf16.mxu0 0
  %506 = vmatpush1.bf16.msra.mxu0 %v475
  %507 = vmatprep.subr.bf16.mxu0 0
  %508 = vmatpush2.bf16.msra.mxu0 0
  %509 = vmatprep.subr.bf16.mxu0 0
  %510 = vmatpush2.bf16.msra.mxu0 0
  %511 = vmatprep.subr.bf16.mxu0 0
  %512 = vmatpush2.bf16.msra.mxu0 0
  %513 = vmatprep.subr.bf16.mxu0 0
  %514 = vmatpush2.bf16.msra.mxu0 0
  %515 = vmatprep.subr.bf16.mxu0 0
  %516 = vmatpush2.bf16.msra.mxu0 0
  %517 = vmatprep.subr.bf16.mxu0 0
  %518 = vmatpush2.bf16.msra.mxu0 0
  %519 = vmatprep.subr.bf16.mxu0 0
  %520 = vmatpush2.bf16.msra.mxu0 0
  %521 = vmatprep.subr.bf16.mxu0 0
  %522 = vmatpush2.bf16.msra.mxu0 0
  %523 = vmatprep.mubr.bf16.mxu0 0
  %524 = vmatmul.mubr.bf16.gmra.mxu0 %v307
  %v525 = vpop.f32.mrf.mxu0
  %v526 = vadd.f32 %v441, %v525
  %v527 = vpop.f32.mrf.mxu0
  %v528 = vpop.f32.mrf.mxu0
  %v529 = vpop.f32.mrf.mxu0
  %530 = vdwg.mxu0
  %v531 = vmax.f32 %v526, 0.0
  %v532 = vpack.c.bf16 %v419, %v419
  %v533 = vld [vmem:[%s7] sm:$0xf]
  %v534 = vld [vmem:[%s7 + $0x4] sm:$0xf]
  %v535 = vld [vmem:[%s7 + $0x8] sm:$0xf]
  %v536 = vld [vmem:[%s7 + $0xc] sm:$0xf]
  %v537 = vld [vmem:[%s7 + $0x10] sm:$0xf]
  %v538 = vld [vmem:[%s7 + $0x14] sm:$0xf]
  %v539 = vld [vmem:[%s7 + $0x18] sm:$0xf]
  %v540 = vld [vmem:[%s7 + $0x1c] sm:$0xf]
  %v541 = vld [vmem:[%s7 + $0x20] sm:$0xf]
  %v542 = vld [vmem:[%s7 + $0x24] sm:$0xf]
  %v543 = vld [vmem:[%s7 + $0x28] sm:$0xf]
  %v544 = vld [vmem:[%s7 + $0x2c] sm:$0xf]
  %v545 = vld [vmem:[%s7 + $0x30] sm:$0xf]
  %v546 = vld [vmem:[%s7 + $0x34] sm:$0xf]
  %v547 = vld [vmem:[%s7 + $0x38] sm:$0xf]
  %v548 = vld [vmem:[%s7 + $0x3c] sm:$0xf]
  %v549 = vld [vmem:[%s8] sm:$0x1]
  %v551 = vlaneseq
  %v552 = vshrl.u32 %v551, 7
  %v553 = vsub.s32 0, %v552
  %v554 = vrot.slane %v549, %v553
  %v572 = vunpack.c.l.b16 %v533
  %v573 = vunpack.c.l.b16 %v534
  %v574 = vunpack.c.l.b16 %v535
  %v575 = vunpack.c.l.b16 %v536
  %v576 = vunpack.c.l.b16 %v537
  %v577 = vunpack.c.l.b16 %v538
  %v578 = vunpack.c.l.b16 %v539
  %v579 = vunpack.c.l.b16 %v540
  %v580 = vunpack.c.l.b16 %v541
  %v581 = vunpack.c.l.b16 %v542
  %v582 = vunpack.c.l.b16 %v543
  %v583 = vunpack.c.l.b16 %v544
  %v584 = vunpack.c.l.b16 %v545
  %v585 = vunpack.c.l.b16 %v546
  %v586 = vunpack.c.l.b16 %v547
  %v587 = vunpack.c.l.b16 %v548
  %v588 = vpack.c.b16 %v573, %v572
  %v589 = vpack.c.b16 %v575, %v574
  %v590 = vpack.c.b16 %v577, %v576
  %v591 = vpack.c.b16 %v579, %v578
  %v592 = vpack.c.b16 %v581, %v580
  %v593 = vpack.c.b16 %v583, %v582
  %v594 = vpack.c.b16 %v585, %v584
  %v595 = vpack.c.b16 %v587, %v586
  %604 = vmatprep.subr.bf16.mxu0 0
  %605 = vmatpush1.bf16.msra.mxu0 %v595
  %606 = vmatprep.subr.bf16.mxu0 0
  %607 = vmatpush1.bf16.msra.mxu0 %v594
  %608 = vmatprep.subr.bf16.mxu0 0
  %609 = vmatpush1.bf16.msra.mxu0 %v593
  %610 = vmatprep.subr.bf16.mxu0 0
  %611 = vmatpush1.bf16.msra.mxu0 %v592
  %612 = vmatprep.subr.bf16.mxu0 0
  %613 = vmatpush1.bf16.msra.mxu0 %v591
  %614 = vmatprep.subr.bf16.mxu0 0
  %615 = vmatpush1.bf16.msra.mxu0 %v590
  %616 = vmatprep.subr.bf16.mxu0 0
  %617 = vmatpush1.bf16.msra.mxu0 %v589
  %618 = vmatprep.subr.bf16.mxu0 0
  %619 = vmatpush1.bf16.msra.mxu0 %v588
  %620 = vmatprep.subr.bf16.mxu0 0
  %621 = vmatpush2.bf16.msra.mxu0 0
  %622 = vmatprep.subr.bf16.mxu0 0
  %623 = vmatpush2.bf16.msra.mxu0 0
  %624 = vmatprep.subr.bf16.mxu0 0
  %625 = vmatpush2.bf16.msra.mxu0 0
  %626 = vmatprep.subr.bf16.mxu0 0
  %627 = vmatpush2.bf16.msra.mxu0 0
  %628 = vmatprep.subr.bf16.mxu0 0
  %629 = vmatpush2.bf16.msra.mxu0 0
  %630 = vmatprep.subr.bf16.mxu0 0
  %631 = vmatpush2.bf16.msra.mxu0 0
  %632 = vmatprep.subr.bf16.mxu0 0
  %633 = vmatpush2.bf16.msra.mxu0 0
  %634 = vmatprep.subr.bf16.mxu0 0
  %635 = vmatpush2.bf16.msra.mxu0 0
  %636 = vmatprep.mubr.bf16.mxu0 0
  %637 = vmatmul.mubr.bf16.gmra.mxu0 %v532
  %v638 = vpop.f32.mrf.mxu0
  %v639 = vadd.f32 %v554, %v638
  %v640 = vpop.f32.mrf.mxu0
  %v641 = vpop.f32.mrf.mxu0
  %v642 = vpop.f32.mrf.mxu0
  %643 = vdwg.mxu0
  %v644 = vtanh.pop %v639
  %v645 = vpack.c.bf16 %v531, %v531
  %v646 = vld [vmem:[%s11] sm:$0xf]
  %v647 = vld [vmem:[%s11 + $0x4] sm:$0xf]
  %v648 = vld [vmem:[%s11 + $0x8] sm:$0xf]
  %v649 = vld [vmem:[%s11 + $0xc] sm:$0xf]
  %v650 = vld [vmem:[%s11 + $0x10] sm:$0xf]
  %v651 = vld [vmem:[%s11 + $0x14] sm:$0xf]
  %v652 = vld [vmem:[%s11 + $0x18] sm:$0xf]
  %v653 = vld [vmem:[%s11 + $0x1c] sm:$0xf]
  %v654 = vld [vmem:[%s11 + $0x20] sm:$0xf]
  %v655 = vld [vmem:[%s11 + $0x24] sm:$0xf]
  %v656 = vld [vmem:[%s11 + $0x28] sm:$0xf]
  %v657 = vld [vmem:[%s11 + $0x2c] sm:$0xf]
  %v658 = vld [vmem:[%s11 + $0x30] sm:$0xf]
  %v659 = vld [vmem:[%s11 + $0x34] sm:$0xf]
  %v660 = vld [vmem:[%s11 + $0x38] sm:$0xf]
  %v661 = vld [vmem:[%s11 + $0x3c] sm:$0xf]
  %v662 = vld [vmem:[%s12] sm:$0x1]
  %v664 = vlaneseq
  %v665 = vshrl.u32 %v664, 7
  %v666 = vsub.s32 0, %v665
  %v667 = vrot.slane %v662, %v666
  %v685 = vunpack.c.l.b16 %v646
  %v686 = vunpack.c.l.b16 %v647
  %v687 = vunpack.c.l.b16 %v648
  %v688 = vunpack.c.l.b16 %v649
  %v689 = vunpack.c.l.b16 %v650
  %v690 = vunpack.c.l.b16 %v651
  %v691 = vunpack.c.l.b16 %v652
  %v692 = vunpack.c.l.b16 %v653
  %v693 = vunpack.c.l.b16 %v654
  %v694 = vunpack.c.l.b16 %v655
  %v695 = vunpack.c.l.b16 %v656
  %v696 = vunpack.c.l.b16 %v657
  %v697 = vunpack.c.l.b16 %v658
  %v698 = vunpack.c.l.b16 %v659
  %v699 = vunpack.c.l.b16 %v660
  %v700 = vunpack.c.l.b16 %v661
  %v701 = vpack.c.b16 %v686, %v685
  %v702 = vpack.c.b16 %v688, %v687
  %v703 = vpack.c.b16 %v690, %v689
  %v704 = vpack.c.b16 %v692, %v691
  %v705 = vpack.c.b16 %v694, %v693
  %v706 = vpack.c.b16 %v696, %v695
  %v707 = vpack.c.b16 %v698, %v697
  %v708 = vpack.c.b16 %v700, %v699
  %717 = vmatprep.subr.bf16.mxu0 0
  %718 = vmatpush1.bf16.msra.mxu0 %v708
  %719 = vmatprep.subr.bf16.mxu0 0
  %720 = vmatpush1.bf16.msra.mxu0 %v707
  %721 = vmatprep.subr.bf16.mxu0 0
  %722 = vmatpush1.bf16.msra.mxu0 %v706
  %723 = vmatprep.subr.bf16.mxu0 0
  %724 = vmatpush1.bf16.msra.mxu0 %v705
  %725 = vmatprep.subr.bf16.mxu0 0
  %726 = vmatpush1.bf16.msra.mxu0 %v704
  %727 = vmatprep.subr.bf16.mxu0 0
  %728 = vmatpush1.bf16.msra.mxu0 %v703
  %729 = vmatprep.subr.bf16.mxu0 0
  %730 = vmatpush1.bf16.msra.mxu0 %v702
  %731 = vmatprep.subr.bf16.mxu0 0
  %732 = vmatpush1.bf16.msra.mxu0 %v701
  %733 = vmatprep.subr.bf16.mxu0 0
  %734 = vmatpush2.bf16.msra.mxu0 0
  %735 = vmatprep.subr.bf16.mxu0 0
  %736 = vmatpush2.bf16.msra.mxu0 0
  %737 = vmatprep.subr.bf16.mxu0 0
  %738 = vmatpush2.bf16.msra.mxu0 0
  %739 = vmatprep.subr.bf16.mxu0 0
  %740 = vmatpush2.bf16.msra.mxu0 0
  %741 = vmatprep.subr.bf16.mxu0 0
  %742 = vmatpush2.bf16.msra.mxu0 0
  %743 = vmatprep.subr.bf16.mxu0 0
  %744 = vmatpush2.bf16.msra.mxu0 0
  %745 = vmatprep.subr.bf16.mxu0 0
  %746 = vmatpush2.bf16.msra.mxu0 0
  %747 = vmatprep.subr.bf16.mxu0 0
  %748 = vmatpush2.bf16.msra.mxu0 0
  %749 = vmatprep.mubr.bf16.mxu0 0
  %750 = vmatmul.mubr.bf16.gmra.mxu0 %v645
  %v751 = vpop.f32.mrf.mxu0
  %v752 = vadd.f32 %v667, %v751
  %v753 = vpop.f32.mrf.mxu0
  %v754 = vpop.f32.mrf.mxu0
  %v755 = vpop.f32.mrf.mxu0
  %756 = vdwg.mxu0
  %v757 = vsub.f32 1.0, %v48
  %v758 = vmul.f32 %v644, 1.442695
  %v759 = vpow.pop %v758
  %v760 = vmul.f32 %v47, %v759
  %v761 = vadd.f32 %v760, %v752
  %v763 = vlaneseq
  %v764 = vshrl.u32 %v763, 7
  %v765 = vsub.s32 0, %v764
  %v766 = vrot.slane %v757, %v765
  %v768 = vmul.f32 %v766, %v761
  %v769 = vadd.f32 %v55, %v768
  %770 = vst [vmem:[%s13] sm:$0xff] %v769
  %771 = vadd.xlane.f32.xlu0 %v644
  %v772 = vpop.xlane.xlu0 %771
  %773 = vst [vmem:[%s14] sm:$0xff] %v772
  // Predicated region
  $region54: #{conditional_coupling_forward.1} parent=0 // pred_check
    _
  $region55: #{conditional_coupling_forward.1} parent=0 // pred_check_branch
    %775 = sbr.rel (0) target = $region57
  $region56: #{conditional_coupling_forward.1} parent=0 // pred_region
    _
  $region57: #{conditional_coupling_forward.1} parent=0 // pred_fallthru
    _
  // Predicated region
  $region58: #{conditional_coupling_forward.1} parent=0 // pred_check
    _
  $region59: #{conditional_coupling_forward.1} parent=0 // pred_check_branch
    %777 = sbr.rel (0) target = $region61
  $region60: #{conditional_coupling_forward.1} parent=0 // pred_region
    _
  $region61: #{conditional_coupling_forward.1} parent=0 // pred_fallthru
    _
  // Predicated region
  $region62: #{conditional_coupling_forward.1} parent=0 // pred_check
    _
  $region63: #{conditional_coupling_forward.1} parent=0 // pred_check_branch
    %779 = sbr.rel (0) target = $region65
  $region64: #{conditional_coupling_forward.1} parent=0 // pred_region
    _
  $region65: #{conditional_coupling_forward.1} parent=0 // pred_fallthru
    _
  // Predicated region
  $region66: #{conditional_coupling_forward.1} parent=0 // pred_check
    _
  $region67: #{conditional_coupling_forward.1} parent=0 // pred_check_branch
    %781 = sbr.rel (0) target = $region69
  $region68: #{conditional_coupling_forward.1} parent=0 // pred_region
    _
  $region69: #{conditional_coupling_forward.1} parent=0 // pred_fallthru
    _

</llo_original>
